<compile_context>
chip_gen: v7x
topology: tpu7x:2x2x1
jax: 0.10.0
libtpu: 0.0.40
codegen_flags: <defaults>
</compile_context>

<pallas_src>
import functools

import jax
import jax.numpy as jnp
from jax.experimental import pallas as pl
from jax.experimental.pallas import tpu as pltpu


# ---------------------------------------------------------------------------
# Activation helpers
# ---------------------------------------------------------------------------
def _apply_act(x, hidden_act):
    if hidden_act in ("silu", "swiglu"):
        return x * jax.nn.sigmoid(x)
    elif hidden_act == "relu":
        return jnp.maximum(x, 0.0)
    elif hidden_act == "gelu":
        # PyTorch nn.GELU() default is the exact (erf-based) GELU.
        return jax.nn.gelu(x, approximate=False)
    else:
        raise ValueError(f"Unsupported activation function: {hidden_act}")


# ---------------------------------------------------------------------------
# Kernels
# ---------------------------------------------------------------------------
def _ffn_swiglu_kernel(x_ref, wg_ref, wu_ref, wd_ref, o_ref, acc_ref, *, nj):
    """SwiGLU FFN with the intermediate dimension tiled (grid axis 1).

    x_ref  : (tm, H)     token tile (resident across j)
    wg_ref : (H, tn)     gate-proj weight slab
    wu_ref : (H, tn)     up-proj weight slab
    wd_ref : (tn, H)     down-proj weight tile
    o_ref  : (tm, H)     output tile (written on last j)
    acc_ref: (tm, H) f32 VMEM accumulator scratch
    """
    j = pl.program_id(1)

    x = x_ref[...]
    gate = jnp.dot(x, wg_ref[...], preferred_element_type=jnp.float32)
    up = jnp.dot(x, wu_ref[...], preferred_element_type=jnp.float32)
    h = (gate * jax.nn.sigmoid(gate)) * up
    partial = jnp.dot(h.astype(x.dtype), wd_ref[...],
                      preferred_element_type=jnp.float32)

    if nj == 1:
        # Single reduction step: bypass the accumulator entirely.
        o_ref[...] = partial.astype(o_ref.dtype)
    else:
        @pl.when(j == 0)
        def _():
            acc_ref[...] = partial              # folded: no zero-then-+=

        @pl.when(jnp.logical_and(j > 0, j < nj - 1))
        def _():
            acc_ref[...] += partial

        @pl.when(j == nj - 1)
        def _():
            # folded epilogue: no += followed by a readback
            o_ref[...] = (acc_ref[...] + partial).astype(o_ref.dtype)


def _ffn_plain_kernel(x_ref, wg_ref, wd_ref, o_ref, acc_ref, *, nj, hidden_act):
    """Non-gated FFN: down(act(gate(x))).  up_proj is never transferred."""
    j = pl.program_id(1)

    x = x_ref[...]
    gate = jnp.dot(x, wg_ref[...], preferred_element_type=jnp.float32)
    h = _apply_act(gate, hidden_act)
    partial = jnp.dot(h.astype(x.dtype), wd_ref[...],
                      preferred_element_type=jnp.float32)

    if nj == 1:
        o_ref[...] = partial.astype(o_ref.dtype)
    else:
        @pl.when(j == 0)
        def _():
            acc_ref[...] = partial

        @pl.when(jnp.logical_and(j > 0, j < nj - 1))
        def _():
            acc_ref[...] += partial

        @pl.when(j == nj - 1)
        def _():
            o_ref[...] = (acc_ref[...] + partial).astype(o_ref.dtype)


# ---------------------------------------------------------------------------
# Hardware-aware sizing helpers (trace-time, host Python)
# ---------------------------------------------------------------------------
def _vmem_budget_and_limit():
    """(tile-sizing budget, vmem_limit_bytes) per TPU generation."""
    try:
        phys = pltpu.get_tpu_info().vmem_capacity_bytes
    except Exception:
        phys = None
    if phys is None:
        return 40 << 20, 48 << 20            # legal on every generation
    if phys >= (100 << 20):                  # 128-MiB parts (v5e / v6e)
        return 88 << 20, 100 << 20           # ~16 MiB headroom for Mosaic scratch
    return 48 << 20, 56 << 20                # 64-MiB parts (v7x)


def _num_tensorcores():
    try:
        info = pltpu.get_tpu_info()
    except Exception:
        return 1
    for name in ("num_cores", "core_count", "num_tensorcores", "tensor_cores"):
        v = getattr(info, name, None)
        if isinstance(v, int) and v > 0:
            return v
    return 1


def _default_tn_target():
    try:
        if pltpu.get_tpu_info().vmem_capacity_bytes >= (100 << 20):
            return 1024                      # halves nj on 128-MiB parts
    except Exception:
        pass
    return 512


def _pick_tn(intermediate_size, target):
    """Largest lane-aligned (multiple-of-128) divisor of I not above target."""
    if intermediate_size <= target:
        return intermediate_size
    tn = (target // 128) * 128
    while tn >= 128:
        if intermediate_size % tn == 0:
            return tn
        tn -= 128
    # No lane-aligned divisor <= target: take the smallest one above it.
    tn = ((target // 128) + 1) * 128
    while tn < intermediate_size:
        if intermediate_size % tn == 0:
            return tn
        tn += 128
    # TODO(synk): pad I to a multiple of 128 for pathological sizes instead of
    # falling back to the full (un-tiled) intermediate dimension.
    return intermediate_size


def _pick_tm(M, H, tn, x_isz, w_isz, n_weight_mats, budget_bytes, tm_cap):
    """Largest token tile that fits the VMEM budget (double-buffered BlockSpecs)."""
    weight_bytes = n_weight_mats * 2 * H * tn * w_isz      # 2x: double-buffered slabs
    per_row = H * (2 * x_isz + 2 * x_isz + 4)              # x(2), out(2), f32 acc(1)
    avail = budget_bytes - weight_bytes
    tm = max(avail // per_row, 128) if per_row > 0 else tm_cap
    tm = int(min(tm, tm_cap))
    if tm >= M:
        return M
    if tm >= 128:
        tm = (tm // 128) * 128
    else:
        tm = max(8, (tm // 8) * 8)
    return min(tm, M)


# ---------------------------------------------------------------------------
# One-time weight preparation (model init, NOT per forward)
# ---------------------------------------------------------------------------
def prepare_ffn_weights(w_gate, w_up, w_down, hidden_act,
                        *, tn_target=None, compute_dtype=None):
    """Transpose / cast weights once and pick the intermediate tile size.

    w_gate, w_up : (I, H)  PyTorch nn.Linear layout (out_features, in_features)
    w_down       : (H, I)
    Returns (w_gate_t, w_up_t_or_None, w_down_t, tn) with
      w_gate_t, w_up_t : (H, I)   w_down_t : (I, H)
    For non-gated activations w_up_t is None (never transferred).
    Pass compute_dtype=jnp.bfloat16 for production (bf16 MXU, f32 accumulate).
    """
    I, H = w_gate.shape
    if compute_dtype is None:
        compute_dtype = w_gate.dtype
    if tn_target is None:
        tn_target = _default_tn_target()
    tn = _pick_tn(I, tn_target)

    wg_t = jnp.asarray(w_gate, dtype=compute_dtype).T       # (H, I)
    wd_t = jnp.asarray(w_down, dtype=compute_dtype).T       # (I, H)
    wu_t = (jnp.asarray(w_up, dtype=compute_dtype).T
            if hidden_act == "swiglu" else None)
    return wg_t, wu_t, wd_t, tn


# ---------------------------------------------------------------------------
# Forward
# ---------------------------------------------------------------------------
def ffn_forward(x, w_gate_t, w_up_t, w_down_t, tn, hidden_act="swiglu",
                *, tm=None, vmem_limit_bytes=None):
    """FFN forward matching the PyTorch module.

    x: (B, S, H) in the compute dtype (use bf16 in production).
    w_gate_t / w_up_t / w_down_t / tn: from prepare_ffn_weights (same hidden_act).
    """
    B, S, H = x.shape
    I = w_down_t.shape[0]
    assert I % tn == 0
    nj = I // tn
    M = B * S

    x_isz = jnp.dtype(x.dtype).itemsize
    w_isz = jnp.dtype(w_down_t.dtype).itemsize
    n_w = 3 if hidden_act == "swiglu" else 2

    budget, auto_limit = _vmem_budget_and_limit()
    if vmem_limit_bytes is None:
        vmem_limit_bytes = auto_limit
    else:
        budget = max(vmem_limit_bytes - (8 << 20), vmem_limit_bytes * 3 // 4)

    # ---- token-tile sizing ------------------------------------------------
    if tm is None:
        tm_cap = 1024
        cores = _num_tensorcores()
        if cores > 1 and M >= 256 * cores:
            # Keep at least `cores` i-tiles so the parallel axis feeds every TC.
            tm_cap = min(tm_cap, max(128, (((M + cores - 1) // cores) // 128) * 128))
        tm_eff = _pick_tm(M, H, tn, x_isz, w_isz, n_w, budget, tm_cap)
    else:
        tm_eff = min(tm, M)

    # ---- ragged-M handling: prefer a divisor of M over padding ------------
    if tm_eff >= M:
        tm_eff, Mp = M, M
    elif M % tm_eff == 0:
        Mp = M
    else:
        best = 0
        d = (tm_eff // 8) * 8
        while d >= 8:
            if M % d == 0:
                best = d
                break
            d -= 8
        if best >= max(8, tm_eff // 4):
            tm_eff, Mp = best, M
        else:
            # TODO(synk): masked ragged last i-tile would avoid this extra HBM copy.
            Mp = pl.cdiv(M, tm_eff) * tm_eff

    x2 = x.reshape(M, H)
    if Mp != M:
        x2 = jnp.pad(x2, ((0, Mp - M), (0, 0)))

    n_i = Mp // tm_eff

    # ---- cost estimate (advisory, helps XLA schedule surrounding ops) -----
    flops = 2 * M * H * I * n_w
    transcendentals = M * I if hidden_act in ("swiglu", "silu", "gelu") else 0
    bytes_accessed = n_i * (n_w * H * I * w_isz) + 2 * M * H * x_isz
    cost = pl.CostEstimate(flops=flops, transcendentals=transcendentals,
                           bytes_accessed=bytes_accessed)

    # ---- specs -------------------------------------------------------------
    x_spec = pl.BlockSpec((tm_eff, H), lambda i, j: (i, 0))
    out_spec = pl.BlockSpec((tm_eff, H), lambda i, j: (i, 0))
    wcol_spec = pl.BlockSpec((H, tn), lambda i, j: (0, j))      # gate / up slabs
    wd_spec = pl.BlockSpec((tn, H), lambda i, j: (j, 0))        # down-proj tile

    if hidden_act == "swiglu":
        assert w_up_t is not None
        kernel = functools.partial(_ffn_swiglu_kernel, nj=nj)
        in_specs = [x_spec, wcol_spec, wcol_spec, wd_spec]
        operands = (x2, w_gate_t, w_up_t, w_down_t)
    else:
        kernel = functools.partial(_ffn_plain_kernel, nj=nj, hidden_act=hidden_act)
        in_specs = [x_spec, wcol_spec, wd_spec]
        operands = (x2, w_gate_t, w_down_t)

    out2 = pl.pallas_call(
        kernel,
        out_shape=jax.ShapeDtypeStruct((Mp, H), x.dtype),
        grid_spec=pltpu.PrefetchScalarGridSpec(
            num_scalar_prefetch=0,
            grid=(n_i, nj),                       # reduction (I tiles) last
            in_specs=in_specs,
            out_specs=out_spec,
            scratch_shapes=[pltpu.VMEM((tm_eff, H), jnp.float32)],
        ),
        compiler_params=pltpu.CompilerParams(
            dimension_semantics=("parallel", "arbitrary"),
            vmem_limit_bytes=vmem_limit_bytes),
        cost_estimate=cost,
    )(*operands)

    if Mp != M:
        out2 = out2[:M]
    return out2.reshape(B, S, H)


# ---------------------------------------------------------------------------
# Pure-JAX reference (mirrors the PyTorch forward)
# ---------------------------------------------------------------------------
def ffn_reference(x, w_gate, w_up, w_down, hidden_act="swiglu"):
    gate = jnp.einsum("bsh,ih->bsi", x, w_gate)
    if hidden_act == "swiglu":
        h = (gate * jax.nn.sigmoid(gate)) * jnp.einsum("bsh,ih->bsi", x, w_up)
    else:
        h = _apply_act(gate, hidden_act)
    return jnp.einsum("bsi,hi->bsh", h, w_down)


if __name__ == "__main__":
    # Small shapes consistent with the module: (batch, seq, hidden).
    batch, seq, hidden_size, intermediate_size = 2, 8, 32, 64

    key = jax.random.PRNGKey(0)
    kx, kg, ku, kd = jax.random.split(key, 4)

    x = jax.random.normal(kx, (batch, seq, hidden_size), dtype=jnp.float32)
    # Weights in PyTorch nn.Linear layout (out_features, in_features).
    w_gate = jax.random.normal(kg, (intermediate_size, hidden_size),
                               dtype=jnp.float32) * 0.05
    w_up = jax.random.normal(ku, (intermediate_size, hidden_size),
                             dtype=jnp.float32) * 0.05
    w_down = jax.random.normal(kd, (hidden_size, intermediate_size),
                               dtype=jnp.float32) * 0.05

    # --- swiglu, f32 (tight check vs reference) ---
    wg_t, wu_t, wd_t, tn = prepare_ffn_weights(w_gate, w_up, w_down, "swiglu")
    out = jax.block_until_ready(
        ffn_forward(x, wg_t, wu_t, wd_t, tn, hidden_act="swiglu"))
    ref = ffn_reference(x, w_gate, w_up, w_down, "swiglu")
    assert out.shape == (batch, seq, hidden_size)
    assert jnp.allclose(out, ref, atol=1e-5, rtol=1e-5), "swiglu mismatch"

    # --- non-gated path (relu), f32: up_proj is never transferred ---
    wg_r, _, wd_r, tn_r = prepare_ffn_weights(w_gate, w_up, w_down, "relu")
    out_r = jax.block_until_ready(
        ffn_forward(x, wg_r, None, wd_r, tn_r, hidden_act="relu"))
    ref_r = ffn_reference(x, w_gate, w_up, w_down, "relu")
    assert jnp.allclose(out_r, ref_r, atol=1e-5, rtol=1e-5), "relu mismatch"

    # --- swiglu, bf16 compute (production path): bf16 MXU, f32 accumulation ---
    wg_bf, wu_bf, wd_bf, tn_bf = prepare_ffn_weights(
        w_gate, w_up, w_down, "swiglu", compute_dtype=jnp.bfloat16)
    out_bf = jax.block_until_ready(
        ffn_forward(x.astype(jnp.bfloat16), wg_bf, wu_bf, wd_bf, tn_bf,
                    hidden_act="swiglu"))
    assert out_bf.shape == (batch, seq, hidden_size)
    assert jnp.allclose(out_bf.astype(jnp.float32), ref,
                        atol=3e-2, rtol=3e-2), "bf16 swiglu mismatch"

    # --- multi-tile path: exercises nj>1 accumulation and n_i>1 token tiles ---
    hs2, is2 = 32, 256
    kx2, kg2, ku2, kd2 = jax.random.split(jax.random.PRNGKey(1), 4)
    x2 = jax.random.normal(kx2, (batch, seq, hs2), dtype=jnp.float32)
    wg2 = jax.random.normal(kg2, (is2, hs2), dtype=jnp.float32) * 0.05
    wu2 = jax.random.normal(ku2, (is2, hs2), dtype=jnp.float32) * 0.05
    wd2 = jax.random.normal(kd2, (hs2, is2), dtype=jnp.float32) * 0.05
    wg2_t, wu2_t, wd2_t, tn2 = prepare_ffn_weights(
        wg2, wu2, wd2, "swiglu", tn_target=128)      # -> tn=128, nj=2
    out2 = jax.block_until_ready(
        ffn_forward(x2, wg2_t, wu2_t, wd2_t, tn2, hidden_act="swiglu", tm=8))
    ref2 = ffn_reference(x2, wg2, wu2, wd2, "swiglu")
    assert jnp.allclose(out2, ref2, atol=1e-5, rtol=1e-5), "tiled swiglu mismatch"

    print("KERNEL_OK")
</pallas_src>

<mosaic_0001>
module attributes {stable_mosaic.version = 11 : i64} {
  func.func @_ffn_swiglu_kernel(%arg0: i32, %arg1: i32, %arg2: memref<16x32xf32, #tpu.memory_space<vmem>>, %arg3: memref<32x64xf32, #tpu.memory_space<vmem>>, %arg4: memref<32x64xf32, #tpu.memory_space<vmem>>, %arg5: memref<64x32xf32, #tpu.memory_space<vmem>>, %arg6: memref<16x32xf32, #tpu.memory_space<vmem>>, %arg7: memref<16x32xf32, #tpu.memory_space<vmem>>) attributes {dimension_semantics = [#tpu.dimension_semantics<parallel>, #tpu.dimension_semantics<arbitrary>], iteration_bounds = array<i64: 1, 1>, scalar_prefetch = 0 : i64, scratch_operands = 1 : i64, tpu.core_type = #tpu.core_type<tc>, window_params = [{transform_indices = @transform_0, window_bounds = array<i64: 16, 32>}, {transform_indices = @transform_1, window_bounds = array<i64: 32, 64>}, {transform_indices = @transform_2, window_bounds = array<i64: 32, 64>}, {transform_indices = @transform_3, window_bounds = array<i64: 64, 32>}, {transform_indices = @transform_4, window_bounds = array<i64: 16, 32>}]} {
    %c0 = arith.constant 0 : index
    %c0_0 = arith.constant 0 : index
    %0 = vector.load %arg2[%c0, %c0_0] : memref<16x32xf32, #tpu.memory_space<vmem>>, vector<16x32xf32>
    %c0_1 = arith.constant 0 : index
    %c0_2 = arith.constant 0 : index
    %1 = vector.load %arg3[%c0_1, %c0_2] : memref<32x64xf32, #tpu.memory_space<vmem>>, vector<32x64xf32>
    %cst = arith.constant dense<0.000000e+00> : vector<16x64xf32>
    %2 = tpu.matmul %0, %1, %cst {dimension_numbers = #tpu.dot_dimension_numbers<[1], [0], [0], [1], [0, 0, 1, 1], [], []>} : vector<16x32xf32>, vector<32x64xf32>, vector<16x64xf32> -> vector<16x64xf32>
    %c0_3 = arith.constant 0 : index
    %c0_4 = arith.constant 0 : index
    %3 = vector.load %arg4[%c0_3, %c0_4] : memref<32x64xf32, #tpu.memory_space<vmem>>, vector<32x64xf32>
    %cst_5 = arith.constant dense<0.000000e+00> : vector<16x64xf32>
    %4 = tpu.matmul %0, %3, %cst_5 {dimension_numbers = #tpu.dot_dimension_numbers<[1], [0], [0], [1], [0, 0, 1, 1], [], []>} : vector<16x32xf32>, vector<32x64xf32>, vector<16x64xf32> -> vector<16x64xf32>
    %5 = arith.negf %2 : vector<16x64xf32>
    %6 = math.exp %5 : vector<16x64xf32>
    %cst_6 = arith.constant 1.000000e+00 : f32
    %7 = vector.broadcast %cst_6 : f32 to vector<16x64xf32>
    %8 = arith.addf %7, %6 : vector<16x64xf32>
    %9 = arith.divf %7, %8 : vector<16x64xf32>
    %10 = arith.mulf %2, %9 : vector<16x64xf32>
    %11 = arith.mulf %10, %4 : vector<16x64xf32>
    %c0_7 = arith.constant 0 : index
    %c0_8 = arith.constant 0 : index
    %12 = vector.load %arg5[%c0_7, %c0_8] : memref<64x32xf32, #tpu.memory_space<vmem>>, vector<64x32xf32>
    %cst_9 = arith.constant dense<0.000000e+00> : vector<16x32xf32>
    %13 = tpu.matmul %11, %12, %cst_9 {dimension_numbers = #tpu.dot_dimension_numbers<[1], [0], [0], [1], [0, 0, 1, 1], [], []>} : vector<16x64xf32>, vector<64x32xf32>, vector<16x32xf32> -> vector<16x32xf32>
    %c0_10 = arith.constant 0 : index
    %c0_11 = arith.constant 0 : index
    %14 = vector.load %arg6[%c0_10, %c0_11] : memref<16x32xf32, #tpu.memory_space<vmem>>, vector<16x32xf32>
    tpu.vector_store %arg6[%c0_10, %c0_11], %13 {strides = array<i32>} : memref<16x32xf32, #tpu.memory_space<vmem>>, vector<16x32xf32>,
    return
  }
  func.func @transform_0(%arg0: i32, %arg1: i32) -> (i32, i32) {
    %c0_i32 = arith.constant 0 : i32
    %c0_i32_0 = arith.constant 0 : i32
    return %arg0, %c0_i32 : i32, i32
  }
  func.func @transform_1(%arg0: i32, %arg1: i32) -> (i32, i32) {
    %c0_i32 = arith.constant 0 : i32
    %c0_i32_0 = arith.constant 0 : i32
    return %c0_i32, %arg1 : i32, i32
  }
  func.func @transform_2(%arg0: i32, %arg1: i32) -> (i32, i32) {
    %c0_i32 = arith.constant 0 : i32
    %c0_i32_0 = arith.constant 0 : i32
    return %c0_i32, %arg1 : i32, i32
  }
  func.func @transform_3(%arg0: i32, %arg1: i32) -> (i32, i32) {
    %c0_i32 = arith.constant 0 : i32
    %c0_i32_0 = arith.constant 0 : i32
    return %arg1, %c0_i32 : i32, i32
  }
  func.func @transform_4(%arg0: i32, %arg1: i32) -> (i32, i32) {
    %c0_i32 = arith.constant 0 : i32
    %c0_i32_0 = arith.constant 0 : i32
    return %arg0, %c0_i32 : i32, i32
  }
}

</mosaic_0001>

<llo_original>
// kernel: tpu_custom_call.1
$region0: #{tpu_custom_call.1}
  #allocation0 [shape = 'u32[]', space=smem, size = 0x4, offset = 0x4, fixed_abs, tag = 'smem constant byte address 0x4 - core index']
  #allocation1 [shape = 'u32[144,128]{1,0:T(1,128)}', space=vmem, size = 0x12000, scoped, tag = 'internal scratch']
  #allocation2 [shape = 'f32[16,32]{1,0:T(8,128)}', space=vmem, size = 0x2000, scoped, tag = 'scratch operand']
  %s0 = inlined_call_operand.vmem [shape: f32[16,32], index: 0, kind: input, shape index: {}]
  %s1 = inlined_call_operand.vmem [shape: f32[32,64], index: 1, kind: input, shape index: {}]
  %s2 = inlined_call_operand.vmem [shape: f32[32,64], index: 2, kind: input, shape index: {}]
  %s3 = inlined_call_operand.vmem [shape: f32[64,32], index: 3, kind: input, shape index: {}]
  %s4 = inlined_call_operand.hbm [shape: f32[16,32], index: 4, kind: output, shape index: {}]
  %s5 = sld [smem:[#allocation0]]
  $region26: #{tpu_custom_call.1} parent=0
    _
  %s7 = ssub.s32 1, %s5
  %s8 = scalar_select 0, %s7, %s5
  $region1: #{tpu_custom_call.1} parent=0
    #allocation3 [shape = 'u8[8192]{0}', space=vmem, size = 0x2000, scoped, tag = 'output window, operand 0, single buffered']
    #allocation4 [shape = 's32[1]{0}', space=sflag, size = 0x4, scoped, tag = 'scoped memory for tpu_custom_call.1']
    %9 = vsyncpa [#allocation4], 0
    // Predicated region
    $region2: #{tpu_custom_call.1} parent=1 // pred_check
      _
    $region3: #{tpu_custom_call.1} parent=1 // pred_check_branch
      %11 = sbr.rel (0) target = $region5
    $region4: #{tpu_custom_call.1} parent=1 // pred_region
      _
    $region5: #{tpu_custom_call.1} parent=1 // pred_fallthru
      _
    // Predicated region
    $region6: #{tpu_custom_call.1} parent=1 // pred_check
      _
    $region7: #{tpu_custom_call.1} parent=1 // pred_check_branch
      %13 = sbr.rel (0) target = $region9
    $region8: #{tpu_custom_call.1} parent=1 // pred_region
      _
    $region9: #{tpu_custom_call.1} parent=1 // pred_fallthru
      _
    // Predicated region
    $region10: #{tpu_custom_call.1} parent=1 // pred_check
      _
    $region11: #{tpu_custom_call.1} parent=1 // pred_check_branch
      %15 = sbr.rel (0) target = $region13
    $region12: #{tpu_custom_call.1} parent=1 // pred_region
      _
    $region13: #{tpu_custom_call.1} parent=1 // pred_fallthru
      _
    // Predicated region
    $region14: #{tpu_custom_call.1} parent=1 // pred_check
      _
    $region15: #{tpu_custom_call.1} parent=1 // pred_check_branch
      %17 = sbr.rel (0) target = $region17
    $region16: #{tpu_custom_call.1} parent=1 // pred_region
      _
    $region17: #{tpu_custom_call.1} parent=1 // pred_fallthru
      _
    %v18 = vld [vmem:[%s0] sm:$0xff]
    %v19 = vld [vmem:[%s0 + $0x8] sm:$0xff]
    %v20 = vld [vmem:[%s1] sm:$0xff]
    %v21 = vld [vmem:[%s1 + $0x8] sm:$0xff]
    %v22 = vld [vmem:[%s1 + $0x10] sm:$0xff]
    %v23 = vld [vmem:[%s1 + $0x18] sm:$0xff]
    %vm24 = vcmask 261120
    %v26 = vsel %vm24, %v18, 0
    %v29 = vsel %vm24, %v19, 0
    %31 = vmatprep.subr.mxu0 0.0
    %32 = vmatpush1.msra.mxu0 %v20
    %33 = vmatprep.subr.mxu0 0.0
    %34 = vmatpush1.msra.mxu0 %v21
    %35 = vmatprep.subr.mxu0 0.0
    %36 = vmatpush1.msra.mxu0 %v22
    %37 = vmatprep.subr.mxu0 0.0
    %38 = vmatpush1.msra.mxu0 %v23
    %39 = vmatprep.subr.mxu0 0.0
    %40 = vmatpush1.msra.mxu0 0.0
    %41 = vmatprep.subr.mxu0 0.0
    %42 = vmatpush1.msra.mxu0 0.0
    %43 = vmatprep.subr.mxu0 0.0
    %44 = vmatpush1.msra.mxu0 0.0
    %45 = vmatprep.subr.mxu0 0.0
    %46 = vmatpush1.msra.mxu0 0.0
    %47 = vmatprep.subr.mxu0 0.0
    %48 = vmatpush1.msra.mxu0 0.0
    %49 = vmatprep.subr.mxu0 0.0
    %50 = vmatpush1.msra.mxu0 0.0
    %51 = vmatprep.subr.mxu0 0.0
    %52 = vmatpush1.msra.mxu0 0.0
    %53 = vmatprep.subr.mxu0 0.0
    %54 = vmatpush1.msra.mxu0 0.0
    %55 = vmatprep.subr.mxu0 0.0
    %56 = vmatpush1.msra.mxu0 0.0
    %57 = vmatprep.subr.mxu0 0.0
    %58 = vmatpush1.msra.mxu0 0.0
    %59 = vmatprep.subr.mxu0 0.0
    %60 = vmatpush1.msra.mxu0 0.0
    %61 = vmatprep.subr.mxu0 0.0
    %62 = vmatpush1.msra.mxu0 0.0
    %63 = vmatprep.subr.mxu0 0.0
    %64 = vmatpush1.msra.mxu0 0.0
    %65 = vmatprep.subr.mxu0 0.0
    %66 = vmatpush1.msra.mxu0 0.0
    %67 = vmatprep.subr.mxu0 0.0
    %68 = vmatpush1.msra.mxu0 0.0
    %69 = vmatprep.subr.mxu0 0.0
    %70 = vmatpush1.msra.mxu0 0.0
    %71 = vmatprep.subr.mxu0 0.0
    %72 = vmatpush1.msra.mxu0 0.0
    %73 = vmatprep.subr.mxu0 0.0
    %74 = vmatpush1.msra.mxu0 0.0
    %75 = vmatprep.subr.mxu0 0.0
    %76 = vmatpush1.msra.mxu0 0.0
    %77 = vmatprep.subr.mxu0 0.0
    %78 = vmatpush1.msra.mxu0 0.0
    %79 = vmatprep.subr.mxu0 0.0
    %80 = vmatpush1.msra.mxu0 0.0
    %81 = vmatprep.subr.mxu0 0.0
    %82 = vmatpush1.msra.mxu0 0.0
    %83 = vmatprep.subr.mxu0 0.0
    %84 = vmatpush1.msra.mxu0 0.0
    %85 = vmatprep.subr.mxu0 0.0
    %86 = vmatpush1.msra.mxu0 0.0
    %87 = vmatprep.subr.mxu0 0.0
    %88 = vmatpush1.msra.mxu0 0.0
    %89 = vmatprep.subr.mxu0 0.0
    %90 = vmatpush1.msra.mxu0 0.0
    %91 = vmatprep.subr.mxu0 0.0
    %92 = vmatpush1.msra.mxu0 0.0
    %93 = vmatprep.subr.mxu0 0.0
    %94 = vmatpush1.msra.mxu0 0.0
    %95 = vmatprep.mubr.f32.mxu0 0.0
    %96 = vmatmul.mubr.f32.gmra.mrb[0].mxu0 %v26
    %v97 = vpop.f32.mrb[0].mxu0
    %v98 = vadd.f32 0.0, %v97
    %v99 = vpop.f32.mrb[0].mxu0
    %100 = vmatprep.mubr.f32.mxu0 0.0
    %101 = vmatmul.mubr.f32.gmra.mrb[0].mxu0 %v29
    %v102 = vpop.f32.mrb[0].mxu0
    %v103 = vadd.f32 0.0, %v102
    %v104 = vpop.f32.mrb[0].mxu0
    %105 = vdwg.mxu0
    %v106 = vld [vmem:[%s2] sm:$0xff]
    %v107 = vld [vmem:[%s2 + $0x8] sm:$0xff]
    %v108 = vld [vmem:[%s2 + $0x10] sm:$0xff]
    %v109 = vld [vmem:[%s2 + $0x18] sm:$0xff]
    %110 = vmatprep.subr.mxu0 0.0
    %111 = vmatpush1.msra.mxu0 %v106
    %112 = vmatprep.subr.mxu0 0.0
    %113 = vmatpush1.msra.mxu0 %v107
    %114 = vmatprep.subr.mxu0 0.0
    %115 = vmatpush1.msra.mxu0 %v108
    %116 = vmatprep.subr.mxu0 0.0
    %117 = vmatpush1.msra.mxu0 %v109
    %118 = vmatprep.subr.mxu0 0.0
    %119 = vmatpush1.msra.mxu0 0.0
    %120 = vmatprep.subr.mxu0 0.0
    %121 = vmatpush1.msra.mxu0 0.0
    %122 = vmatprep.subr.mxu0 0.0
    %123 = vmatpush1.msra.mxu0 0.0
    %124 = vmatprep.subr.mxu0 0.0
    %125 = vmatpush1.msra.mxu0 0.0
    %126 = vmatprep.subr.mxu0 0.0
    %127 = vmatpush1.msra.mxu0 0.0
    %128 = vmatprep.subr.mxu0 0.0
    %129 = vmatpush1.msra.mxu0 0.0
    %130 = vmatprep.subr.mxu0 0.0
    %131 = vmatpush1.msra.mxu0 0.0
    %132 = vmatprep.subr.mxu0 0.0
    %133 = vmatpush1.msra.mxu0 0.0
    %134 = vmatprep.subr.mxu0 0.0
    %135 = vmatpush1.msra.mxu0 0.0
    %136 = vmatprep.subr.mxu0 0.0
    %137 = vmatpush1.msra.mxu0 0.0
    %138 = vmatprep.subr.mxu0 0.0
    %139 = vmatpush1.msra.mxu0 0.0
    %140 = vmatprep.subr.mxu0 0.0
    %141 = vmatpush1.msra.mxu0 0.0
    %142 = vmatprep.subr.mxu0 0.0
    %143 = vmatpush1.msra.mxu0 0.0
    %144 = vmatprep.subr.mxu0 0.0
    %145 = vmatpush1.msra.mxu0 0.0
    %146 = vmatprep.subr.mxu0 0.0
    %147 = vmatpush1.msra.mxu0 0.0
    %148 = vmatprep.subr.mxu0 0.0
    %149 = vmatpush1.msra.mxu0 0.0
    %150 = vmatprep.subr.mxu0 0.0
    %151 = vmatpush1.msra.mxu0 0.0
    %152 = vmatprep.subr.mxu0 0.0
    %153 = vmatpush1.msra.mxu0 0.0
    %154 = vmatprep.subr.mxu0 0.0
    %155 = vmatpush1.msra.mxu0 0.0
    %156 = vmatprep.subr.mxu0 0.0
    %157 = vmatpush1.msra.mxu0 0.0
    %158 = vmatprep.subr.mxu0 0.0
    %159 = vmatpush1.msra.mxu0 0.0
    %160 = vmatprep.subr.mxu0 0.0
    %161 = vmatpush1.msra.mxu0 0.0
    %162 = vmatprep.subr.mxu0 0.0
    %163 = vmatpush1.msra.mxu0 0.0
    %164 = vmatprep.subr.mxu0 0.0
    %165 = vmatpush1.msra.mxu0 0.0
    %166 = vmatprep.subr.mxu0 0.0
    %167 = vmatpush1.msra.mxu0 0.0
    %168 = vmatprep.subr.mxu0 0.0
    %169 = vmatpush1.msra.mxu0 0.0
    %170 = vmatprep.subr.mxu0 0.0
    %171 = vmatpush1.msra.mxu0 0.0
    %172 = vmatprep.subr.mxu0 0.0
    %173 = vmatpush1.msra.mxu0 0.0
    %174 = vmatprep.mubr.f32.mxu0 0.0
    %175 = vmatmul.mubr.f32.gmra.mrb[0].mxu0 %v26
    %v176 = vpop.f32.mrb[0].mxu0
    %v177 = vadd.f32 0.0, %v176
    %v178 = vpop.f32.mrb[0].mxu0
    %179 = vmatprep.mubr.f32.mxu0 0.0
    %180 = vmatmul.mubr.f32.gmra.mrb[0].mxu0 %v29
    %v181 = vpop.f32.mrb[0].mxu0
    %v182 = vadd.f32 0.0, %v181
    %v183 = vpop.f32.mrb[0].mxu0
    %184 = vdwg.mxu0
    %v185 = vxor.u32 %v98, 2147483648
    %v186 = vxor.u32 %v103, 2147483648
    %v187 = vmul.f32 %v185, 1.442695
    %v188 = vpow.pop %v187
    %v189 = vmul.f32 %v186, 1.442695
    %v190 = vpow.pop %v189
    %v191 = vadd.f32 %v188, 1.0
    %v192 = vadd.f32 %v190, 1.0
    %v193 = vrcp.pop %v191
    %v194 = vmul.f32 1.0, %v193
    %v195 = vrcp.pop %v192
    %v196 = vmul.f32 1.0, %v195
    %v197 = vmul.f32 %v98, %v194
    %v198 = vmul.f32 %v103, %v196
    %v199 = vmul.f32 %v197, %v177
    %v200 = vmul.f32 %v198, %v182
    %v201 = vld [vmem:[%s3] sm:$0xff]
    %v202 = vld [vmem:[%s3 + $0x8] sm:$0xff]
    %v203 = vld [vmem:[%s3 + $0x10] sm:$0xff]
    %v204 = vld [vmem:[%s3 + $0x18] sm:$0xff]
    %v205 = vld [vmem:[%s3 + $0x20] sm:$0xff]
    %v206 = vld [vmem:[%s3 + $0x28] sm:$0xff]
    %v207 = vld [vmem:[%s3 + $0x30] sm:$0xff]
    %v208 = vld [vmem:[%s3 + $0x38] sm:$0xff]
    %vm209 = vcmask 523264
    %v211 = vsel %vm209, %v199, 0
    %v214 = vsel %vm209, %v200, 0
    %216 = vmatprep.subr.mxu0 0.0
    %217 = vmatpush1.msra.mxu0 %v201
    %218 = vmatprep.subr.mxu0 0.0
    %219 = vmatpush1.msra.mxu0 %v202
    %220 = vmatprep.subr.mxu0 0.0
    %221 = vmatpush1.msra.mxu0 %v203
    %222 = vmatprep.subr.mxu0 0.0
    %223 = vmatpush1.msra.mxu0 %v204
    %224 = vmatprep.subr.mxu0 0.0
    %225 = vmatpush1.msra.mxu0 %v205
    %226 = vmatprep.subr.mxu0 0.0
    %227 = vmatpush1.msra.mxu0 %v206
    %228 = vmatprep.subr.mxu0 0.0
    %229 = vmatpush1.msra.mxu0 %v207
    %230 = vmatprep.subr.mxu0 0.0
    %231 = vmatpush1.msra.mxu0 %v208
    %232 = vmatprep.subr.mxu0 0.0
    %233 = vmatpush1.msra.mxu0 0.0
    %234 = vmatprep.subr.mxu0 0.0
    %235 = vmatpush1.msra.mxu0 0.0
    %236 = vmatprep.subr.mxu0 0.0
    %237 = vmatpush1.msra.mxu0 0.0
    %238 = vmatprep.subr.mxu0 0.0
    %239 = vmatpush1.msra.mxu0 0.0
    %240 = vmatprep.subr.mxu0 0.0
    %241 = vmatpush1.msra.mxu0 0.0
    %242 = vmatprep.subr.mxu0 0.0
    %243 = vmatpush1.msra.mxu0 0.0
    %244 = vmatprep.subr.mxu0 0.0
    %245 = vmatpush1.msra.mxu0 0.0
    %246 = vmatprep.subr.mxu0 0.0
    %247 = vmatpush1.msra.mxu0 0.0
    %248 = vmatprep.subr.mxu0 0.0
    %249 = vmatpush1.msra.mxu0 0.0
    %250 = vmatprep.subr.mxu0 0.0
    %251 = vmatpush1.msra.mxu0 0.0
    %252 = vmatprep.subr.mxu0 0.0
    %253 = vmatpush1.msra.mxu0 0.0
    %254 = vmatprep.subr.mxu0 0.0
    %255 = vmatpush1.msra.mxu0 0.0
    %256 = vmatprep.subr.mxu0 0.0
    %257 = vmatpush1.msra.mxu0 0.0
    %258 = vmatprep.subr.mxu0 0.0
    %259 = vmatpush1.msra.mxu0 0.0
    %260 = vmatprep.subr.mxu0 0.0
    %261 = vmatpush1.msra.mxu0 0.0
    %262 = vmatprep.subr.mxu0 0.0
    %263 = vmatpush1.msra.mxu0 0.0
    %264 = vmatprep.subr.mxu0 0.0
    %265 = vmatpush1.msra.mxu0 0.0
    %266 = vmatprep.subr.mxu0 0.0
    %267 = vmatpush1.msra.mxu0 0.0
    %268 = vmatprep.subr.mxu0 0.0
    %269 = vmatpush1.msra.mxu0 0.0
    %270 = vmatprep.subr.mxu0 0.0
    %271 = vmatpush1.msra.mxu0 0.0
    %272 = vmatprep.subr.mxu0 0.0
    %273 = vmatpush1.msra.mxu0 0.0
    %274 = vmatprep.subr.mxu0 0.0
    %275 = vmatpush1.msra.mxu0 0.0
    %276 = vmatprep.subr.mxu0 0.0
    %277 = vmatpush1.msra.mxu0 0.0
    %278 = vmatprep.subr.mxu0 0.0
    %279 = vmatpush1.msra.mxu0 0.0
    %280 = vmatprep.mubr.f32.mxu0 0.0
    %281 = vmatmul.mubr.f32.gmra.mrb[0].mxu0 %v211
    %v282 = vpop.f32.mrb[0].mxu0
    %v283 = vadd.f32 0.0, %v282
    %v284 = vpop.f32.mrb[0].mxu0
    %285 = vmatprep.mubr.f32.mxu0 0.0
    %286 = vmatmul.mubr.f32.gmra.mrb[0].mxu0 %v214
    %v287 = vpop.f32.mrb[0].mxu0
    %v288 = vadd.f32 0.0, %v287
    %v289 = vpop.f32.mrb[0].mxu0
    %290 = vdwg.mxu0
    %291 = vst.msk [vmem:[#allocation3] sm:$0xff] %vm24, %v283
    %292 = vst.msk [vmem:[#allocation3 + $0x8] sm:$0xff] %vm24, %v288
    // Predicated region
    $region18: #{tpu_custom_call.1} parent=1 // pred_check
      _
    $region19: #{tpu_custom_call.1} parent=1 // pred_check_branch
      %294 = sbr.rel (0) target = $region21
    $region20: #{tpu_custom_call.1} parent=1 // pred_region
      %s296 = ssub.s32 256, 256
      %297 = vsyncadd [#allocation4], %s296
      %s298 = sshll.u32 [#allocation3], 4
      %s299 = int_to_ptr.vmem [resolvable:$true] %s298
      %304 = dma.vmem_to_hbm [thread:$0]  %s299, 256, %s4, [#allocation4], 128, 128, 8
    $region21: #{tpu_custom_call.1} parent=1 // pred_fallthru
      _
    // Predicated region
    $region22: #{tpu_custom_call.1} parent=1 // pred_check
      _
    $region23: #{tpu_custom_call.1} parent=1 // pred_check_branch
      %306 = sbr.rel (0) target = $region25
    $region24: #{tpu_custom_call.1} parent=1 // pred_region
      %307 = dma.done [#allocation4], 256
    $region25: #{tpu_custom_call.1} parent=1 // pred_fallthru
      _
    %308 = vsyncpa [#allocation4], 1

</llo_original>
